<compile_context>
chip_gen: v7x
topology: tpu7x:2x2x1
jax: 0.10.0
libtpu: 0.0.40
codegen_flags: <defaults>
</compile_context>

<pallas_src>
import functools

import jax
import jax.numpy as jnp
from jax.experimental import pallas as pl
from jax.experimental.pallas import tpu as pltpu

INPUT_SIZE = 784
NUM_CLASSES = 10
LANE = 128
SUBLANE = 8
DEFAULT_TB = 1024  # batch-tile rows; sized for v7x's VMEM, fine on v5e/v6e


def _round_up(x, m):
    return ((x + m - 1) // m) * m


def _linear_kernel(x_ref, w_ref, b_ref, o_ref):
    # x_ref: (TB, K_pad) bf16   -- streamed batch tile
    # w_ref: (K_pad, N_pad) bf16 -- VMEM-resident (constant index_map)
    # b_ref: (1, N_pad) f32      -- VMEM-resident
    # o_ref: (TB, N_pad) f32     -- lane-dense (N_pad multiple of 128)
    acc = jnp.dot(x_ref[...], w_ref[...], preferred_element_type=jnp.float32)
    o_ref[...] = (acc + b_ref[...]).astype(o_ref.dtype)


def prepare_params(weight, bias):
    """One-time param prep (hoisted out of the per-call forward path).

    Args:
      weight: (num_classes, input_size) f32 (PyTorch nn.Linear convention)
      bias:   (num_classes,) f32
    Returns:
      w_packed: (K_pad, N_pad) bf16 -- transposed, zero-padded
      b_packed: (1, N_pad) f32      -- zero-padded
    """
    out_features, in_features = weight.shape
    k_pad = _round_up(in_features, LANE)
    n_pad = _round_up(out_features, LANE)
    w_packed = (
        jnp.zeros((k_pad, n_pad), jnp.float32)
        .at[:in_features, :out_features]
        .set(weight.T.astype(jnp.float32))
    ).astype(jnp.bfloat16)
    b_packed = (
        jnp.zeros((1, n_pad), jnp.float32).at[0, :out_features].set(bias)
    )
    return w_packed, b_packed


@functools.partial(jax.jit, static_argnames=("num_classes",))
def logistic_regression_forward(x, w_packed, b_packed, *, num_classes=NUM_CLASSES):
    """Forward pass of nn.Linear(input_size, num_classes): logits = x @ W^T + b.

    Args:
      x:        (B, input_size) f32
      w_packed: (K_pad, N_pad) bf16 from prepare_params
      b_packed: (1, N_pad) f32 from prepare_params
    Returns:
      (B, num_classes) f32 logits.
    """
    B, in_features = x.shape
    k_pad, n_pad = w_packed.shape

    # Batch tile: at most DEFAULT_TB rows, rounded to the sublane granule so
    # tiny batches (e.g. B=8) still form one clean tile.
    tb = min(DEFAULT_TB, _round_up(B, SUBLANE))
    b_pad = _round_up(B, tb)

    # Pad rows to a tile multiple and K to 128-multiple; cast to bf16 once.
    x_p = (
        jnp.zeros((b_pad, k_pad), jnp.bfloat16)
        .at[:B, :in_features]
        .set(x.astype(jnp.bfloat16))
    )

    grid = (b_pad // tb,)
    out_pad = pl.pallas_call(
        _linear_kernel,
        out_shape=jax.ShapeDtypeStruct((b_pad, n_pad), jnp.float32),
        grid_spec=pltpu.PrefetchScalarGridSpec(
            num_scalar_prefetch=0,
            grid=grid,
            in_specs=[
                pl.BlockSpec((tb, k_pad), lambda i: (i, 0)),      # x: streamed
                pl.BlockSpec((k_pad, n_pad), lambda i: (0, 0)),   # W: resident
                pl.BlockSpec((1, n_pad), lambda i: (0, 0)),       # b: resident
            ],
            out_specs=pl.BlockSpec((tb, n_pad), lambda i: (i, 0)),
        ),
        compiler_params=pltpu.CompilerParams(
            dimension_semantics=("parallel",),   # batch tiles are independent
            vmem_limit_bytes=32 * 1024 * 1024,   # headroom on all generations
        ),
    )(x_p, w_packed, b_packed)

    return out_pad[:B, :num_classes]


def init_params(key, input_size=INPUT_SIZE, num_classes=NUM_CLASSES):
    """Deterministic init mirroring nn.Linear's uniform(-1/sqrt(in), 1/sqrt(in))."""
    k_w, k_b = jax.random.split(key)
    bound = 1.0 / jnp.sqrt(jnp.float32(input_size))
    weight = jax.random.uniform(
        k_w, (num_classes, input_size), jnp.float32, -bound, bound)
    bias = jax.random.uniform(
        k_b, (num_classes,), jnp.float32, -bound, bound)
    return weight, bias


if __name__ == "__main__":
    key = jax.random.PRNGKey(0)
    k_x, k_p = jax.random.split(key)

    batch = 8
    x = jax.random.normal(k_x, (batch, INPUT_SIZE), jnp.float32)
    weight, bias = init_params(k_p)

    w_packed, b_packed = prepare_params(weight, bias)
    out = logistic_regression_forward(x, w_packed, b_packed)
    out = jax.block_until_ready(out)
    assert out.shape == (batch, NUM_CLASSES)

    # Reference with the same bf16 input quantization + f32 accumulation.
    x_bf = x.astype(jnp.bfloat16).astype(jnp.float32)
    w_bf = weight.astype(jnp.bfloat16).astype(jnp.float32)
    ref_bf16 = x_bf @ w_bf.T + bias
    assert jnp.allclose(out, ref_bf16, atol=1e-3, rtol=1e-3), "bf16 ref mismatch"

    # Looser check against the pure-f32 reference (bounds bf16 quantization).
    ref_f32 = x @ weight.T + bias
    assert jnp.allclose(out, ref_f32, atol=3e-2, rtol=3e-2), "f32 ref mismatch"

    print("KERNEL_OK")
</pallas_src>

<mosaic_0001>
module attributes {stable_mosaic.version = 11 : i64} {
  func.func @_linear_kernel(%arg0: i32, %arg1: memref<8x896xbf16, #tpu.memory_space<vmem>>, %arg2: memref<896x128xbf16, #tpu.memory_space<vmem>>, %arg3: memref<1x128xf32, #tpu.memory_space<vmem>>, %arg4: memref<8x128xf32, #tpu.memory_space<vmem>>) attributes {dimension_semantics = [#tpu.dimension_semantics<parallel>], iteration_bounds = array<i64: 1>, scalar_prefetch = 0 : i64, scratch_operands = 0 : i64, tpu.core_type = #tpu.core_type<tc>, window_params = [{transform_indices = @transform_0, window_bounds = array<i64: 8, 896>}, {pipeline_mode = #tpu.pipeline_mode<synchronous>, transform_indices = @transform_1, window_bounds = array<i64: 896, 128>}, {pipeline_mode = #tpu.pipeline_mode<synchronous>, transform_indices = @transform_2, window_bounds = array<i64: 1, 128>}, {transform_indices = @transform_3, window_bounds = array<i64: 8, 128>}]} {
    %c0 = arith.constant 0 : index
    %c0_0 = arith.constant 0 : index
    %0 = vector.load %arg1[%c0, %c0_0] : memref<8x896xbf16, #tpu.memory_space<vmem>>, vector<8x896xbf16>
    %c0_1 = arith.constant 0 : index
    %c0_2 = arith.constant 0 : index
    %1 = vector.load %arg2[%c0_1, %c0_2] : memref<896x128xbf16, #tpu.memory_space<vmem>>, vector<896x128xbf16>
    %cst = arith.constant dense<0.000000e+00> : vector<8x128xf32>
    %2 = tpu.matmul %0, %1, %cst {dimension_numbers = #tpu.dot_dimension_numbers<[1], [0], [0], [1], [0, 0, 1, 1], [], []>} : vector<8x896xbf16>, vector<896x128xbf16>, vector<8x128xf32> -> vector<8x128xf32>
    %c0_3 = arith.constant 0 : index
    %c0_4 = arith.constant 0 : index
    %3 = vector.load %arg3[%c0_3, %c0_4] : memref<1x128xf32, #tpu.memory_space<vmem>>, vector<1x128xf32>
    %4 = vector.broadcast %3 : vector<1x128xf32> to vector<8x128xf32>
    %5 = arith.addf %2, %4 : vector<8x128xf32>
    %c0_5 = arith.constant 0 : index
    %c0_6 = arith.constant 0 : index
    %6 = vector.load %arg4[%c0_5, %c0_6] : memref<8x128xf32, #tpu.memory_space<vmem>>, vector<8x128xf32>
    tpu.vector_store %arg4[%c0_5, %c0_6], %5 {strides = array<i32>} : memref<8x128xf32, #tpu.memory_space<vmem>>, vector<8x128xf32>,
    return
  }
  func.func @transform_0(%arg0: i32) -> (i32, i32) {
    %c0_i32 = arith.constant 0 : i32
    %c0_i32_0 = arith.constant 0 : i32
    return %arg0, %c0_i32 : i32, i32
  }
  func.func @transform_1(%arg0: i32) -> (i32, i32) {
    %c0_i32 = arith.constant 0 : i32
    %c0_i32_0 = arith.constant 0 : i32
    %c0_i32_1 = arith.constant 0 : i32
    return %c0_i32, %c0_i32_0 : i32, i32
  }
  func.func @transform_2(%arg0: i32) -> (i32, i32) {
    %c0_i32 = arith.constant 0 : i32
    %c0_i32_0 = arith.constant 0 : i32
    %c0_i32_1 = arith.constant 0 : i32
    return %c0_i32, %c0_i32_0 : i32, i32
  }
  func.func @transform_3(%arg0: i32) -> (i32, i32) {
    %c0_i32 = arith.constant 0 : i32
    %c0_i32_0 = arith.constant 0 : i32
    return %arg0, %c0_i32 : i32, i32
  }
}

</mosaic_0001>

<llo_original>
// kernel: logistic_regression_forward.1
$region0: #{logistic_regression_forward.1}
  #allocation0 [shape = 'u32[]', space=smem, size = 0x4, offset = 0x4, fixed_abs, tag = 'smem constant byte address 0x4 - core index']
  #allocation1 [shape = 'u32[144,128]{1,0:T(1,128)}', space=vmem, size = 0x12000, scoped, tag = 'internal scratch']
  %s0 = inlined_call_operand.vmem [shape: bf16[8,896], index: 0, kind: input, shape index: {}]
  %s1 = inlined_call_operand.hbm [shape: bf16[896,128], index: 1, kind: input, shape index: {}]
  %s2 = inlined_call_operand.vmem [shape: f32[1,128], index: 2, kind: input, shape index: {}]
  %s3 = inlined_call_operand.hbm [shape: f32[8,128], index: 3, kind: output, shape index: {}]
  %s4 = sld [smem:[#allocation0]]
  $region26: #{logistic_regression_forward.1} parent=0
    _
  %s6 = ssub.s32 1, %s4
  %s7 = scalar_select 0, %s6, %s4
  $region1: #{logistic_regression_forward.1} parent=0
    #allocation2 [shape = 'u8[229376]{0}', space=vmem, size = 0x38000, scoped, tag = 'input window, operand 1, single buffered']
    #allocation3 [shape = 's32[1]{0}', space=sflag, size = 0x4, scoped, tag = 'scoped memory for logistic_regression_forward.1']
    #allocation4 [shape = 's32[1]{0}', space=sflag, size = 0x4, scoped, tag = 'scoped memory for logistic_regression_forward.1']
    #allocation5 [shape = 'u8[4096]{0}', space=vmem, size = 0x1000, scoped, tag = 'output window, operand 0, single buffered']
    %8 = vsyncpa [#allocation3], 0
    %9 = vsyncpa [#allocation4], 0
    // Predicated region
    $region2: #{logistic_regression_forward.1} parent=1 // pred_check
      _
    $region3: #{logistic_regression_forward.1} parent=1 // pred_check_branch
      %11 = sbr.rel (0) target = $region5
    $region4: #{logistic_regression_forward.1} parent=1 // pred_region
      _
    $region5: #{logistic_regression_forward.1} parent=1 // pred_fallthru
      _
    // Predicated region
    $region6: #{logistic_regression_forward.1} parent=1 // pred_check
      _
    $region7: #{logistic_regression_forward.1} parent=1 // pred_check_branch
      %13 = sbr.rel (0) target = $region9
    $region8: #{logistic_regression_forward.1} parent=1 // pred_region
      %s15 = ssub.s32 7168, 7168
      %16 = vsyncadd [#allocation3], %s15
      %s17 = sshll.u32 [#allocation2], 4
      %s18 = int_to_ptr.vmem [resolvable:$true] %s17
      %23 = dma.hbm_to_vmem [thread:$0]  %s1, 7168, %s18, [#allocation3], 64, 64, 4
    $region9: #{logistic_regression_forward.1} parent=1 // pred_fallthru
      _
    // Predicated region
    $region10: #{logistic_regression_forward.1} parent=1 // pred_check
      _
    $region11: #{logistic_regression_forward.1} parent=1 // pred_check_branch
      %25 = sbr.rel (0) target = $region13
    $region12: #{logistic_regression_forward.1} parent=1 // pred_region
      _
    $region13: #{logistic_regression_forward.1} parent=1 // pred_fallthru
      _
    // Predicated region
    $region14: #{logistic_regression_forward.1} parent=1 // pred_check
      _
    $region15: #{logistic_regression_forward.1} parent=1 // pred_check_branch
      %27 = sbr.rel (0) target = $region17
    $region16: #{logistic_regression_forward.1} parent=1 // pred_region
      %28 = dma.done [#allocation3], 7168
    $region17: #{logistic_regression_forward.1} parent=1 // pred_fallthru
      _
    %v30 = vld [vmem:[%s0] sm:$0xff]
    %v31 = vld [vmem:[%s0 + $0x8] sm:$0xff]
    %v32 = vld [vmem:[%s0 + $0x10] sm:$0xff]
    %v33 = vld [vmem:[%s0 + $0x18] sm:$0xf]
    %v34 = vld [vmem:[#allocation2] sm:$0xf]
    %v35 = vld [vmem:[#allocation2 + $0x4] sm:$0xf]
    %v36 = vld [vmem:[#allocation2 + $0x8] sm:$0xf]
    %v37 = vld [vmem:[#allocation2 + $0xc] sm:$0xf]
    %v38 = vld [vmem:[#allocation2 + $0x10] sm:$0xf]
    %v39 = vld [vmem:[#allocation2 + $0x14] sm:$0xf]
    %v40 = vld [vmem:[#allocation2 + $0x18] sm:$0xf]
    %v41 = vld [vmem:[#allocation2 + $0x1c] sm:$0xf]
    %v42 = vld [vmem:[#allocation2 + $0x20] sm:$0xf]
    %v43 = vld [vmem:[#allocation2 + $0x24] sm:$0xf]
    %v44 = vld [vmem:[#allocation2 + $0x28] sm:$0xf]
    %v45 = vld [vmem:[#allocation2 + $0x2c] sm:$0xf]
    %v46 = vld [vmem:[#allocation2 + $0x30] sm:$0xf]
    %v47 = vld [vmem:[#allocation2 + $0x34] sm:$0xf]
    %v48 = vld [vmem:[#allocation2 + $0x38] sm:$0xf]
    %v49 = vld [vmem:[#allocation2 + $0x3c] sm:$0xf]
    %v50 = vld [vmem:[#allocation2 + $0x40] sm:$0xf]
    %v51 = vld [vmem:[#allocation2 + $0x44] sm:$0xf]
    %v52 = vld [vmem:[#allocation2 + $0x48] sm:$0xf]
    %v53 = vld [vmem:[#allocation2 + $0x4c] sm:$0xf]
    %v54 = vld [vmem:[#allocation2 + $0x50] sm:$0xf]
    %v55 = vld [vmem:[#allocation2 + $0x54] sm:$0xf]
    %v56 = vld [vmem:[#allocation2 + $0x58] sm:$0xf]
    %v57 = vld [vmem:[#allocation2 + $0x5c] sm:$0xf]
    %v58 = vld [vmem:[#allocation2 + $0x60] sm:$0xf]
    %v59 = vld [vmem:[#allocation2 + $0x64] sm:$0xf]
    %v60 = vld [vmem:[#allocation2 + $0x68] sm:$0xf]
    %v61 = vld [vmem:[#allocation2 + $0x6c] sm:$0xf]
    %v62 = vld [vmem:[#allocation2 + $0x70] sm:$0xf]
    %v63 = vld [vmem:[#allocation2 + $0x74] sm:$0xf]
    %v64 = vld [vmem:[#allocation2 + $0x78] sm:$0xf]
    %v65 = vld [vmem:[#allocation2 + $0x7c] sm:$0xf]
    %v66 = vld [vmem:[#allocation2 + $0x80] sm:$0xf]
    %v67 = vld [vmem:[#allocation2 + $0x84] sm:$0xf]
    %v68 = vld [vmem:[#allocation2 + $0x88] sm:$0xf]
    %v69 = vld [vmem:[#allocation2 + $0x8c] sm:$0xf]
    %v70 = vld [vmem:[#allocation2 + $0x90] sm:$0xf]
    %v71 = vld [vmem:[#allocation2 + $0x94] sm:$0xf]
    %v72 = vld [vmem:[#allocation2 + $0x98] sm:$0xf]
    %v73 = vld [vmem:[#allocation2 + $0x9c] sm:$0xf]
    %v74 = vld [vmem:[#allocation2 + $0xa0] sm:$0xf]
    %v75 = vld [vmem:[#allocation2 + $0xa4] sm:$0xf]
    %v76 = vld [vmem:[#allocation2 + $0xa8] sm:$0xf]
    %v77 = vld [vmem:[#allocation2 + $0xac] sm:$0xf]
    %v78 = vld [vmem:[#allocation2 + $0xb0] sm:$0xf]
    %v79 = vld [vmem:[#allocation2 + $0xb4] sm:$0xf]
    %v80 = vld [vmem:[#allocation2 + $0xb8] sm:$0xf]
    %v81 = vld [vmem:[#allocation2 + $0xbc] sm:$0xf]
    %v82 = vld [vmem:[#allocation2 + $0xc0] sm:$0xf]
    %v83 = vld [vmem:[#allocation2 + $0xc4] sm:$0xf]
    %v84 = vld [vmem:[#allocation2 + $0xc8] sm:$0xf]
    %v85 = vld [vmem:[#allocation2 + $0xcc] sm:$0xf]
    %v86 = vld [vmem:[#allocation2 + $0xd0] sm:$0xf]
    %v87 = vld [vmem:[#allocation2 + $0xd4] sm:$0xf]
    %v88 = vld [vmem:[#allocation2 + $0xd8] sm:$0xf]
    %v89 = vld [vmem:[#allocation2 + $0xdc] sm:$0xf]
    %v90 = vld [vmem:[#allocation2 + $0xe0] sm:$0xf]
    %v91 = vld [vmem:[#allocation2 + $0xe4] sm:$0xf]
    %v92 = vld [vmem:[#allocation2 + $0xe8] sm:$0xf]
    %v93 = vld [vmem:[#allocation2 + $0xec] sm:$0xf]
    %v94 = vld [vmem:[#allocation2 + $0xf0] sm:$0xf]
    %v95 = vld [vmem:[#allocation2 + $0xf4] sm:$0xf]
    %v96 = vld [vmem:[#allocation2 + $0xf8] sm:$0xf]
    %v97 = vld [vmem:[#allocation2 + $0xfc] sm:$0xf]
    %v98 = vld [vmem:[#allocation2 + $0x100] sm:$0xf]
    %v99 = vld [vmem:[#allocation2 + $0x104] sm:$0xf]
    %v100 = vld [vmem:[#allocation2 + $0x108] sm:$0xf]
    %v101 = vld [vmem:[#allocation2 + $0x10c] sm:$0xf]
    %v102 = vld [vmem:[#allocation2 + $0x110] sm:$0xf]
    %v103 = vld [vmem:[#allocation2 + $0x114] sm:$0xf]
    %v104 = vld [vmem:[#allocation2 + $0x118] sm:$0xf]
    %v105 = vld [vmem:[#allocation2 + $0x11c] sm:$0xf]
    %v106 = vld [vmem:[#allocation2 + $0x120] sm:$0xf]
    %v107 = vld [vmem:[#allocation2 + $0x124] sm:$0xf]
    %v108 = vld [vmem:[#allocation2 + $0x128] sm:$0xf]
    %v109 = vld [vmem:[#allocation2 + $0x12c] sm:$0xf]
    %v110 = vld [vmem:[#allocation2 + $0x130] sm:$0xf]
    %v111 = vld [vmem:[#allocation2 + $0x134] sm:$0xf]
    %v112 = vld [vmem:[#allocation2 + $0x138] sm:$0xf]
    %v113 = vld [vmem:[#allocation2 + $0x13c] sm:$0xf]
    %v114 = vld [vmem:[#allocation2 + $0x140] sm:$0xf]
    %v115 = vld [vmem:[#allocation2 + $0x144] sm:$0xf]
    %v116 = vld [vmem:[#allocation2 + $0x148] sm:$0xf]
    %v117 = vld [vmem:[#allocation2 + $0x14c] sm:$0xf]
    %v118 = vld [vmem:[#allocation2 + $0x150] sm:$0xf]
    %v119 = vld [vmem:[#allocation2 + $0x154] sm:$0xf]
    %v120 = vld [vmem:[#allocation2 + $0x158] sm:$0xf]
    %v121 = vld [vmem:[#allocation2 + $0x15c] sm:$0xf]
    %v122 = vld [vmem:[#allocation2 + $0x160] sm:$0xf]
    %v123 = vld [vmem:[#allocation2 + $0x164] sm:$0xf]
    %v124 = vld [vmem:[#allocation2 + $0x168] sm:$0xf]
    %v125 = vld [vmem:[#allocation2 + $0x16c] sm:$0xf]
    %v126 = vld [vmem:[#allocation2 + $0x170] sm:$0xf]
    %v127 = vld [vmem:[#allocation2 + $0x174] sm:$0xf]
    %v128 = vld [vmem:[#allocation2 + $0x178] sm:$0xf]
    %v129 = vld [vmem:[#allocation2 + $0x17c] sm:$0xf]
    %v130 = vld [vmem:[#allocation2 + $0x180] sm:$0xf]
    %v131 = vld [vmem:[#allocation2 + $0x184] sm:$0xf]
    %v132 = vld [vmem:[#allocation2 + $0x188] sm:$0xf]
    %v133 = vld [vmem:[#allocation2 + $0x18c] sm:$0xf]
    %v134 = vld [vmem:[#allocation2 + $0x190] sm:$0xf]
    %v135 = vld [vmem:[#allocation2 + $0x194] sm:$0xf]
    %v136 = vld [vmem:[#allocation2 + $0x198] sm:$0xf]
    %v137 = vld [vmem:[#allocation2 + $0x19c] sm:$0xf]
    %v138 = vld [vmem:[#allocation2 + $0x1a0] sm:$0xf]
    %v139 = vld [vmem:[#allocation2 + $0x1a4] sm:$0xf]
    %v140 = vld [vmem:[#allocation2 + $0x1a8] sm:$0xf]
    %v141 = vld [vmem:[#allocation2 + $0x1ac] sm:$0xf]
    %v142 = vld [vmem:[#allocation2 + $0x1b0] sm:$0xf]
    %v143 = vld [vmem:[#allocation2 + $0x1b4] sm:$0xf]
    %v144 = vld [vmem:[#allocation2 + $0x1b8] sm:$0xf]
    %v145 = vld [vmem:[#allocation2 + $0x1bc] sm:$0xf]
    %v146 = vld [vmem:[%s2] sm:$0x1]
    %v148 = vlaneseq
    %v149 = vshrl.u32 %v148, 7
    %v150 = vsub.s32 0, %v149
    %v151 = vrot.slane %v146, %v150
    %v157 = vunpack.c.l.b16 %v30
    %v158 = vunpack.c.h.b16 %v30
    %v159 = vunpack.c.l.b16 %v31
    %v160 = vunpack.c.h.b16 %v31
    %v161 = vunpack.c.l.b16 %v32
    %v162 = vunpack.c.h.b16 %v32
    %v163 = vunpack.c.l.b16 %v33
    %v164 = vpack.c.b16 %v157, %v157
    %v165 = vpack.c.b16 %v158, %v158
    %v166 = vpack.c.b16 %v159, %v159
    %v167 = vpack.c.b16 %v160, %v160
    %v168 = vpack.c.b16 %v161, %v161
    %v169 = vpack.c.b16 %v162, %v162
    %v170 = vpack.c.b16 %v163, %v163
    %v290 = vunpack.c.l.b16 %v34
    %v291 = vunpack.c.l.b16 %v35
    %v292 = vunpack.c.l.b16 %v36
    %v293 = vunpack.c.l.b16 %v37
    %v294 = vunpack.c.l.b16 %v38
    %v295 = vunpack.c.l.b16 %v39
    %v296 = vunpack.c.l.b16 %v40
    %v297 = vunpack.c.l.b16 %v41
    %v298 = vunpack.c.l.b16 %v42
    %v299 = vunpack.c.l.b16 %v43
    %v300 = vunpack.c.l.b16 %v44
    %v301 = vunpack.c.l.b16 %v45
    %v302 = vunpack.c.l.b16 %v46
    %v303 = vunpack.c.l.b16 %v47
    %v304 = vunpack.c.l.b16 %v48
    %v305 = vunpack.c.l.b16 %v49
    %v306 = vunpack.c.l.b16 %v50
    %v307 = vunpack.c.l.b16 %v51
    %v308 = vunpack.c.l.b16 %v52
    %v309 = vunpack.c.l.b16 %v53
    %v310 = vunpack.c.l.b16 %v54
    %v311 = vunpack.c.l.b16 %v55
    %v312 = vunpack.c.l.b16 %v56
    %v313 = vunpack.c.l.b16 %v57
    %v314 = vunpack.c.l.b16 %v58
    %v315 = vunpack.c.l.b16 %v59
    %v316 = vunpack.c.l.b16 %v60
    %v317 = vunpack.c.l.b16 %v61
    %v318 = vunpack.c.l.b16 %v62
    %v319 = vunpack.c.l.b16 %v63
    %v320 = vunpack.c.l.b16 %v64
    %v321 = vunpack.c.l.b16 %v65
    %v322 = vunpack.c.l.b16 %v66
    %v323 = vunpack.c.l.b16 %v67
    %v324 = vunpack.c.l.b16 %v68
    %v325 = vunpack.c.l.b16 %v69
    %v326 = vunpack.c.l.b16 %v70
    %v327 = vunpack.c.l.b16 %v71
    %v328 = vunpack.c.l.b16 %v72
    %v329 = vunpack.c.l.b16 %v73
    %v330 = vunpack.c.l.b16 %v74
    %v331 = vunpack.c.l.b16 %v75
    %v332 = vunpack.c.l.b16 %v76
    %v333 = vunpack.c.l.b16 %v77
    %v334 = vunpack.c.l.b16 %v78
    %v335 = vunpack.c.l.b16 %v79
    %v336 = vunpack.c.l.b16 %v80
    %v337 = vunpack.c.l.b16 %v81
    %v338 = vunpack.c.l.b16 %v82
    %v339 = vunpack.c.l.b16 %v83
    %v340 = vunpack.c.l.b16 %v84
    %v341 = vunpack.c.l.b16 %v85
    %v342 = vunpack.c.l.b16 %v86
    %v343 = vunpack.c.l.b16 %v87
    %v344 = vunpack.c.l.b16 %v88
    %v345 = vunpack.c.l.b16 %v89
    %v346 = vunpack.c.l.b16 %v90
    %v347 = vunpack.c.l.b16 %v91
    %v348 = vunpack.c.l.b16 %v92
    %v349 = vunpack.c.l.b16 %v93
    %v350 = vunpack.c.l.b16 %v94
    %v351 = vunpack.c.l.b16 %v95
    %v352 = vunpack.c.l.b16 %v96
    %v353 = vunpack.c.l.b16 %v97
    %v354 = vunpack.c.l.b16 %v98
    %v355 = vunpack.c.l.b16 %v99
    %v356 = vunpack.c.l.b16 %v100
    %v357 = vunpack.c.l.b16 %v101
    %v358 = vunpack.c.l.b16 %v102
    %v359 = vunpack.c.l.b16 %v103
    %v360 = vunpack.c.l.b16 %v104
    %v361 = vunpack.c.l.b16 %v105
    %v362 = vunpack.c.l.b16 %v106
    %v363 = vunpack.c.l.b16 %v107
    %v364 = vunpack.c.l.b16 %v108
    %v365 = vunpack.c.l.b16 %v109
    %v366 = vunpack.c.l.b16 %v110
    %v367 = vunpack.c.l.b16 %v111
    %v368 = vunpack.c.l.b16 %v112
    %v369 = vunpack.c.l.b16 %v113
    %v370 = vunpack.c.l.b16 %v114
    %v371 = vunpack.c.l.b16 %v115
    %v372 = vunpack.c.l.b16 %v116
    %v373 = vunpack.c.l.b16 %v117
    %v374 = vunpack.c.l.b16 %v118
    %v375 = vunpack.c.l.b16 %v119
    %v376 = vunpack.c.l.b16 %v120
    %v377 = vunpack.c.l.b16 %v121
    %v378 = vunpack.c.l.b16 %v122
    %v379 = vunpack.c.l.b16 %v123
    %v380 = vunpack.c.l.b16 %v124
    %v381 = vunpack.c.l.b16 %v125
    %v382 = vunpack.c.l.b16 %v126
    %v383 = vunpack.c.l.b16 %v127
    %v384 = vunpack.c.l.b16 %v128
    %v385 = vunpack.c.l.b16 %v129
    %v386 = vunpack.c.l.b16 %v130
    %v387 = vunpack.c.l.b16 %v131
    %v388 = vunpack.c.l.b16 %v132
    %v389 = vunpack.c.l.b16 %v133
    %v390 = vunpack.c.l.b16 %v134
    %v391 = vunpack.c.l.b16 %v135
    %v392 = vunpack.c.l.b16 %v136
    %v393 = vunpack.c.l.b16 %v137
    %v394 = vunpack.c.l.b16 %v138
    %v395 = vunpack.c.l.b16 %v139
    %v396 = vunpack.c.l.b16 %v140
    %v397 = vunpack.c.l.b16 %v141
    %v398 = vunpack.c.l.b16 %v142
    %v399 = vunpack.c.l.b16 %v143
    %v400 = vunpack.c.l.b16 %v144
    %v401 = vunpack.c.l.b16 %v145
    %v402 = vpack.c.b16 %v291, %v290
    %v403 = vpack.c.b16 %v293, %v292
    %v404 = vpack.c.b16 %v295, %v294
    %v405 = vpack.c.b16 %v297, %v296
    %v406 = vpack.c.b16 %v299, %v298
    %v407 = vpack.c.b16 %v301, %v300
    %v408 = vpack.c.b16 %v303, %v302
    %v409 = vpack.c.b16 %v305, %v304
    %v410 = vpack.c.b16 %v307, %v306
    %v411 = vpack.c.b16 %v309, %v308
    %v412 = vpack.c.b16 %v311, %v310
    %v413 = vpack.c.b16 %v313, %v312
    %v414 = vpack.c.b16 %v315, %v314
    %v415 = vpack.c.b16 %v317, %v316
    %v416 = vpack.c.b16 %v319, %v318
    %v417 = vpack.c.b16 %v321, %v320
    %v418 = vpack.c.b16 %v323, %v322
    %v419 = vpack.c.b16 %v325, %v324
    %v420 = vpack.c.b16 %v327, %v326
    %v421 = vpack.c.b16 %v329, %v328
    %v422 = vpack.c.b16 %v331, %v330
    %v423 = vpack.c.b16 %v333, %v332
    %v424 = vpack.c.b16 %v335, %v334
    %v425 = vpack.c.b16 %v337, %v336
    %v426 = vpack.c.b16 %v339, %v338
    %v427 = vpack.c.b16 %v341, %v340
    %v428 = vpack.c.b16 %v343, %v342
    %v429 = vpack.c.b16 %v345, %v344
    %v430 = vpack.c.b16 %v347, %v346
    %v431 = vpack.c.b16 %v349, %v348
    %v432 = vpack.c.b16 %v351, %v350
    %v433 = vpack.c.b16 %v353, %v352
    %v434 = vpack.c.b16 %v355, %v354
    %v435 = vpack.c.b16 %v357, %v356
    %v436 = vpack.c.b16 %v359, %v358
    %v437 = vpack.c.b16 %v361, %v360
    %v438 = vpack.c.b16 %v363, %v362
    %v439 = vpack.c.b16 %v365, %v364
    %v440 = vpack.c.b16 %v367, %v366
    %v441 = vpack.c.b16 %v369, %v368
    %v442 = vpack.c.b16 %v371, %v370
    %v443 = vpack.c.b16 %v373, %v372
    %v444 = vpack.c.b16 %v375, %v374
    %v445 = vpack.c.b16 %v377, %v376
    %v446 = vpack.c.b16 %v379, %v378
    %v447 = vpack.c.b16 %v381, %v380
    %v448 = vpack.c.b16 %v383, %v382
    %v449 = vpack.c.b16 %v385, %v384
    %v450 = vpack.c.b16 %v387, %v386
    %v451 = vpack.c.b16 %v389, %v388
    %v452 = vpack.c.b16 %v391, %v390
    %v453 = vpack.c.b16 %v393, %v392
    %v454 = vpack.c.b16 %v395, %v394
    %v455 = vpack.c.b16 %v397, %v396
    %v456 = vpack.c.b16 %v399, %v398
    %v457 = vpack.c.b16 %v401, %v400
    %514 = vmatprep.subr.bf16.mxu0 0
    %515 = vmatpush1.bf16.msra.mxu0 %v402
    %516 = vmatprep.subr.bf16.mxu0 0
    %517 = vmatpush1.bf16.msra.mxu0 %v403
    %518 = vmatprep.subr.bf16.mxu0 0
    %519 = vmatpush1.bf16.msra.mxu0 %v404
    %520 = vmatprep.subr.bf16.mxu0 0
    %521 = vmatpush1.bf16.msra.mxu0 %v405
    %522 = vmatprep.subr.bf16.mxu0 0
    %523 = vmatpush1.bf16.msra.mxu0 %v406
    %524 = vmatprep.subr.bf16.mxu0 0
    %525 = vmatpush1.bf16.msra.mxu0 %v407
    %526 = vmatprep.subr.bf16.mxu0 0
    %527 = vmatpush1.bf16.msra.mxu0 %v408
    %528 = vmatprep.subr.bf16.mxu0 0
    %529 = vmatpush1.bf16.msra.mxu0 %v409
    %530 = vmatprep.subr.bf16.mxu0 0
    %531 = vmatpush1.bf16.msra.mxu0 %v410
    %532 = vmatprep.subr.bf16.mxu0 0
    %533 = vmatpush1.bf16.msra.mxu0 %v411
    %534 = vmatprep.subr.bf16.mxu0 0
    %535 = vmatpush1.bf16.msra.mxu0 %v412
    %536 = vmatprep.subr.bf16.mxu0 0
    %537 = vmatpush1.bf16.msra.mxu0 %v413
    %538 = vmatprep.subr.bf16.mxu0 0
    %539 = vmatpush1.bf16.msra.mxu0 %v414
    %540 = vmatprep.subr.bf16.mxu0 0
    %541 = vmatpush1.bf16.msra.mxu0 %v415
    %542 = vmatprep.subr.bf16.mxu0 0
    %543 = vmatpush1.bf16.msra.mxu0 %v416
    %544 = vmatprep.subr.bf16.mxu0 0
    %545 = vmatpush1.bf16.msra.mxu0 %v417
    %546 = vmatprep.mubr.bf16.mxu0 %v165
    %547 = vmatmul.mubr.bf16.gmra.mrb[0].mxu0 %v164
    %v548 = vpop.f32.mrb[0].mxu0
    %v549 = vadd.f32 %v151, %v548
    %v550 = vpop.f32.mrb[0].mxu0
    %v551 = vpop.f32.mrb[0].mxu0
    %v552 = vpop.f32.mrb[0].mxu0
    %553 = vdwg.mxu0
    %554 = vmatprep.subr.bf16.mxu0 0
    %555 = vmatpush1.bf16.msra.mxu0 %v418
    %556 = vmatprep.subr.bf16.mxu0 0
    %557 = vmatpush1.bf16.msra.mxu0 %v419
    %558 = vmatprep.subr.bf16.mxu0 0
    %559 = vmatpush1.bf16.msra.mxu0 %v420
    %560 = vmatprep.subr.bf16.mxu0 0
    %561 = vmatpush1.bf16.msra.mxu0 %v421
    %562 = vmatprep.subr.bf16.mxu0 0
    %563 = vmatpush1.bf16.msra.mxu0 %v422
    %564 = vmatprep.subr.bf16.mxu0 0
    %565 = vmatpush1.bf16.msra.mxu0 %v423
    %566 = vmatprep.subr.bf16.mxu0 0
    %567 = vmatpush1.bf16.msra.mxu0 %v424
    %568 = vmatprep.subr.bf16.mxu0 0
    %569 = vmatpush1.bf16.msra.mxu0 %v425
    %570 = vmatprep.subr.bf16.mxu0 0
    %571 = vmatpush1.bf16.msra.mxu0 %v426
    %572 = vmatprep.subr.bf16.mxu0 0
    %573 = vmatpush1.bf16.msra.mxu0 %v427
    %574 = vmatprep.subr.bf16.mxu0 0
    %575 = vmatpush1.bf16.msra.mxu0 %v428
    %576 = vmatprep.subr.bf16.mxu0 0
    %577 = vmatpush1.bf16.msra.mxu0 %v429
    %578 = vmatprep.subr.bf16.mxu0 0
    %579 = vmatpush1.bf16.msra.mxu0 %v430
    %580 = vmatprep.subr.bf16.mxu0 0
    %581 = vmatpush1.bf16.msra.mxu0 %v431
    %582 = vmatprep.subr.bf16.mxu0 0
    %583 = vmatpush1.bf16.msra.mxu0 %v432
    %584 = vmatprep.subr.bf16.mxu0 0
    %585 = vmatpush1.bf16.msra.mxu0 %v433
    %586 = vmatprep.mubr.bf16.mxu0 %v167
    %587 = vmatmul.mubr.bf16.gmra.mrb[0].mxu0 %v166
    %v588 = vpop.f32.mrb[0].mxu0
    %v589 = vadd.f32 %v549, %v588
    %v590 = vpop.f32.mrb[0].mxu0
    %v591 = vpop.f32.mrb[0].mxu0
    %v592 = vpop.f32.mrb[0].mxu0
    %593 = vdwg.mxu0
    %594 = vmatprep.subr.bf16.mxu0 0
    %595 = vmatpush1.bf16.msra.mxu0 %v434
    %596 = vmatprep.subr.bf16.mxu0 0
    %597 = vmatpush1.bf16.msra.mxu0 %v435
    %598 = vmatprep.subr.bf16.mxu0 0
    %599 = vmatpush1.bf16.msra.mxu0 %v436
    %600 = vmatprep.subr.bf16.mxu0 0
    %601 = vmatpush1.bf16.msra.mxu0 %v437
    %602 = vmatprep.subr.bf16.mxu0 0
    %603 = vmatpush1.bf16.msra.mxu0 %v438
    %604 = vmatprep.subr.bf16.mxu0 0
    %605 = vmatpush1.bf16.msra.mxu0 %v439
    %606 = vmatprep.subr.bf16.mxu0 0
    %607 = vmatpush1.bf16.msra.mxu0 %v440
    %608 = vmatprep.subr.bf16.mxu0 0
    %609 = vmatpush1.bf16.msra.mxu0 %v441
    %610 = vmatprep.subr.bf16.mxu0 0
    %611 = vmatpush1.bf16.msra.mxu0 %v442
    %612 = vmatprep.subr.bf16.mxu0 0
    %613 = vmatpush1.bf16.msra.mxu0 %v443
    %614 = vmatprep.subr.bf16.mxu0 0
    %615 = vmatpush1.bf16.msra.mxu0 %v444
    %616 = vmatprep.subr.bf16.mxu0 0
    %617 = vmatpush1.bf16.msra.mxu0 %v445
    %618 = vmatprep.subr.bf16.mxu0 0
    %619 = vmatpush1.bf16.msra.mxu0 %v446
    %620 = vmatprep.subr.bf16.mxu0 0
    %621 = vmatpush1.bf16.msra.mxu0 %v447
    %622 = vmatprep.subr.bf16.mxu0 0
    %623 = vmatpush1.bf16.msra.mxu0 %v448
    %624 = vmatprep.subr.bf16.mxu0 0
    %625 = vmatpush1.bf16.msra.mxu0 %v449
    %626 = vmatprep.mubr.bf16.mxu0 %v169
    %627 = vmatmul.mubr.bf16.gmra.mrb[0].mxu0 %v168
    %v628 = vpop.f32.mrb[0].mxu0
    %v629 = vadd.f32 %v589, %v628
    %v630 = vpop.f32.mrb[0].mxu0
    %v631 = vpop.f32.mrb[0].mxu0
    %v632 = vpop.f32.mrb[0].mxu0
    %633 = vdwg.mxu0
    %634 = vmatprep.subr.bf16.mxu0 0
    %635 = vmatpush1.bf16.msra.mxu0 %v450
    %636 = vmatprep.subr.bf16.mxu0 0
    %637 = vmatpush1.bf16.msra.mxu0 %v451
    %638 = vmatprep.subr.bf16.mxu0 0
    %639 = vmatpush1.bf16.msra.mxu0 %v452
    %640 = vmatprep.subr.bf16.mxu0 0
    %641 = vmatpush1.bf16.msra.mxu0 %v453
    %642 = vmatprep.subr.bf16.mxu0 0
    %643 = vmatpush1.bf16.msra.mxu0 %v454
    %644 = vmatprep.subr.bf16.mxu0 0
    %645 = vmatpush1.bf16.msra.mxu0 %v455
    %646 = vmatprep.subr.bf16.mxu0 0
    %647 = vmatpush1.bf16.msra.mxu0 %v456
    %648 = vmatprep.subr.bf16.mxu0 0
    %649 = vmatpush1.bf16.msra.mxu0 %v457
    %650 = vmatprep.subr.bf16.mxu0 0
    %651 = vmatpush1.bf16.msra.mxu0 0
    %652 = vmatprep.subr.bf16.mxu0 0
    %653 = vmatpush1.bf16.msra.mxu0 0
    %654 = vmatprep.subr.bf16.mxu0 0
    %655 = vmatpush1.bf16.msra.mxu0 0
    %656 = vmatprep.subr.bf16.mxu0 0
    %657 = vmatpush1.bf16.msra.mxu0 0
    %658 = vmatprep.subr.bf16.mxu0 0
    %659 = vmatpush1.bf16.msra.mxu0 0
    %660 = vmatprep.subr.bf16.mxu0 0
    %661 = vmatpush1.bf16.msra.mxu0 0
    %662 = vmatprep.subr.bf16.mxu0 0
    %663 = vmatpush1.bf16.msra.mxu0 0
    %664 = vmatprep.subr.bf16.mxu0 0
    %665 = vmatpush1.bf16.msra.mxu0 0
    %666 = vmatprep.mubr.bf16.mxu0 0
    %667 = vmatmul.mubr.bf16.gmra.mrb[0].mxu0 %v170
    %v668 = vpop.f32.mrb[0].mxu0
    %v669 = vadd.f32 %v629, %v668
    %v670 = vpop.f32.mrb[0].mxu0
    %v671 = vpop.f32.mrb[0].mxu0
    %v672 = vpop.f32.mrb[0].mxu0
    %673 = vdwg.mxu0
    %674 = vst [vmem:[#allocation5] sm:$0xff] %v669
    // Predicated region
    $region18: #{logistic_regression_forward.1} parent=1 // pred_check
      _
    $region19: #{logistic_regression_forward.1} parent=1 // pred_check_branch
      %676 = sbr.rel (0) target = $region21
    $region20: #{logistic_regression_forward.1} parent=1 // pred_region
      %s678 = ssub.s32 128, 128
      %679 = vsyncadd [#allocation4], %s678
      %s681 = sshll.u32 [#allocation5], 4
      %s682 = int_to_ptr.vmem [resolvable:$true] %s681
      %684 = dma.vmem_to_hbm [thread:$0]  %s682, 128, %s3, [#allocation4]
    $region21: #{logistic_regression_forward.1} parent=1 // pred_fallthru
      _
    // Predicated region
    $region22: #{logistic_regression_forward.1} parent=1 // pred_check
      _
    $region23: #{logistic_regression_forward.1} parent=1 // pred_check_branch
      %686 = sbr.rel (0) target = $region25
    $region24: #{logistic_regression_forward.1} parent=1 // pred_region
      %687 = dma.done [#allocation4], 128
    $region25: #{logistic_regression_forward.1} parent=1 // pred_fallthru
      _
    %688 = vsyncpa [#allocation3], 1
    %689 = vsyncpa [#allocation4], 1

</llo_original>
